<compile_context>
chip_gen: v7x
topology: tpu7x:2x2x1
jax: 0.10.0
libtpu: 0.0.40
codegen_flags: <defaults>
</compile_context>

<pallas_src>
import functools

import jax
import jax.numpy as jnp
from jax.experimental import pallas as pl
from jax.experimental.pallas import tpu as pltpu


# ---------------------------------------------------------------------------
# Kernel: tiled block matmul   out = A_block @ (X_src @ W_block) + bias
#   grid = (M tiles over destination rows [parallel], K tiles over source
#   columns [arbitrary, last]); f32 VMEM accumulator, bias at finalize only.
# ---------------------------------------------------------------------------
def _nodenet_block_kernel(a_ref, x_ref, w_ref, bias_ref, o_ref, acc_ref):
    k = pl.program_id(1)

    @pl.when(k == 0)
    def _init():
        acc_ref[...] = jnp.zeros_like(acc_ref)

    # Per-source feature transform for this K slice (weights pre-placed into
    # disjoint lane blocks of the 128-wide slab), fused with the adjacency
    # aggregation.  No concatenates, no zero-pad copies, no masked stores.
    xw = jnp.dot(x_ref[...], w_ref[...], preferred_element_type=jnp.float32)
    acc_ref[...] += jnp.dot(a_ref[...], xw, preferred_element_type=jnp.float32)

    @pl.when(k == pl.num_programs(1) - 1)
    def _finalize():
        o_ref[...] = (acc_ref[...] + bias_ref[...]).astype(o_ref.dtype)


# ---------------------------------------------------------------------------
# Host-side helpers (wrapper preprocessing, constant-folded under jit)
# ---------------------------------------------------------------------------
def _ceil_to(x, m):
    return ((x + m - 1) // m) * m


def _norm_adj(adj):
    """Fold GraphConv norm='both' into the adjacency (degrees clamped >= 1)."""
    adj = adj.astype(jnp.float32)
    out_deg = jnp.clip(jnp.sum(adj, axis=0), 1.0, None)   # per source node
    in_deg = jnp.clip(jnp.sum(adj, axis=1), 1.0, None)    # per dest node
    return adj * (in_deg ** -0.5)[:, None] * (out_deg ** -0.5)[None, :]


# ---------------------------------------------------------------------------
# NodeNetGNN forward (topo_conv_type='GCN', grid_conv_type='GCN', agg='sum')
# ---------------------------------------------------------------------------
def node_net_gnn_forward(params, graph, node_feat, net_feat, pin_feat,
                         hanna_feat, edge_feat):
    # TODO(synk): pin_feat / edge_feat (and topo_lin / topo_weight /
    # grid_weight) only feed the MPNN / SAGE / CFCNN variants; unused for GCN.
    del pin_feat, edge_feat

    f32 = jnp.float32
    n_cell, in_node = node_feat.shape
    n_net, in_net = net_feat.shape
    n_gcell, in_hanna = hanna_feat.shape
    out_node = params["pinned_w"].shape[1]
    out_net = params["pins_w"].shape[1]
    out_hanna = params["connect_w"].shape[1]

    c8, n8, g8 = _ceil_to(n_cell, 8), _ceil_to(n_net, 8), _ceil_to(n_gcell, 8)
    # Stacked block layout: rows/cols = [cell | net | gcell] (each 8-padded).
    off_cell, off_net, off_gcell = 0, c8, c8 + n8
    size_total = c8 + n8 + g8

    in_total = _ceil_to(in_node + in_net + in_hanna, 8)
    lane_pad = _ceil_to(out_node + out_net + out_hanna, 128)
    col_cell, col_net, col_gcell = 0, out_node, out_node + out_net
    fcol_cell, fcol_net, fcol_gcell = 0, in_node, in_node + in_net

    # ---- tile sizes: full block at toy sizes, 512x1024 f32 at real sizes ----
    # (fits v7x's 64 MiB VMEM double-buffered; re-derive per generation).
    tile_m = 512 if size_total > 512 else size_total      # multiple of 8
    tile_k = 1024 if size_total > 1024 else size_total    # mult of 128 or full
    d_pad = _ceil_to(size_total, tile_m)
    s_pad = _ceil_to(size_total, tile_k)

    # ---- block adjacency with norm='both' pre-folded (f32, exact) ----------
    # TODO(synk): production netlists are sparse; this dense block adjacency
    # is a toy stand-in (and would be streamed as 0/1 int8/fp8 with factored
    # degree norms at real sizes).
    a = jnp.zeros((d_pad, s_pad), f32)
    a = a.at[off_cell:off_cell + n_cell,
             off_net:off_net + n_net].set(_norm_adj(graph["pinned"]))
    a = a.at[off_cell:off_cell + n_cell,
             off_gcell:off_gcell + n_gcell].set(_norm_adj(graph["point_from"]))
    a = a.at[off_net:off_net + n_net,
             off_cell:off_cell + n_cell].set(_norm_adj(graph["pins"]))
    a = a.at[off_net:off_net + n_net,
             off_net:off_net + n_net].set(jnp.eye(n_net, dtype=f32))  # net_lin
    a = a.at[off_gcell:off_gcell + n_gcell,
             off_gcell:off_gcell + n_gcell].set(_norm_adj(graph["connect"]))
    a = a.at[off_gcell:off_gcell + n_gcell,
             off_cell:off_cell + n_cell].set(_norm_adj(graph["point_to"]))

    # ---- stacked source features (block-diagonal in the feature columns) ---
    x = jnp.zeros((s_pad, in_total), f32)
    x = x.at[off_cell:off_cell + n_cell,
             fcol_cell:fcol_cell + in_node].set(node_feat.astype(f32))
    x = x.at[off_net:off_net + n_net,
             fcol_net:fcol_net + in_net].set(net_feat.astype(f32))
    x = x.at[off_gcell:off_gcell + n_gcell,
             fcol_gcell:fcol_gcell + in_hanna].set(hanna_feat.astype(f32))

    # ---- stacked, lane-placed weights: one (in_total, 128) slab.  Each
    #      source type's rows carry ALL relations it feeds, placed in the
    #      disjoint lane block of the corresponding destination type. -------
    w = jnp.zeros((in_total, lane_pad), f32)
    # cell sources feed 'pins' (-> net lanes) and 'point-to' (-> gcell lanes)
    w = w.at[fcol_cell:fcol_cell + in_node,
             col_net:col_net + out_net].set(params["pins_w"].astype(f32))
    w = w.at[fcol_cell:fcol_cell + in_node,
             col_gcell:col_gcell + out_hanna].set(params["pointto_w"].astype(f32))
    # net sources feed 'pinned' (-> cell lanes) and net_lin (-> net lanes)
    w = w.at[fcol_net:fcol_net + in_net,
             col_cell:col_cell + out_node].set(params["pinned_w"].astype(f32))
    w = w.at[fcol_net:fcol_net + in_net,
             col_net:col_net + out_net].set(params["net_lin_w"].astype(f32))
    # gcell sources feed 'connect' (-> gcell lanes) and 'point-from' (-> cell)
    w = w.at[fcol_gcell:fcol_gcell + in_hanna,
             col_gcell:col_gcell + out_hanna].set(params["connect_w"].astype(f32))
    w = w.at[fcol_gcell:fcol_gcell + in_hanna,
             col_cell:col_cell + out_node].set(params["pointfrom_w"].astype(f32))

    # ---- per-destination-row bias (relations sharing a dst type pre-summed)
    bias = jnp.zeros((d_pad, lane_pad), f32)
    bias = bias.at[off_cell:off_cell + c8, col_cell:col_cell + out_node].set(
        jnp.broadcast_to(params["pinned_b"] + params["pointfrom_b"],
                         (c8, out_node)).astype(f32))
    bias = bias.at[off_net:off_net + n8, col_net:col_net + out_net].set(
        jnp.broadcast_to(params["pins_b"] + params["net_lin_b"],
                         (n8, out_net)).astype(f32))
    bias = bias.at[off_gcell:off_gcell + g8, col_gcell:col_gcell + out_hanna].set(
        jnp.broadcast_to(params["connect_b"] + params["pointto_b"],
                         (g8, out_hanna)).astype(f32))

    grid = (d_pad // tile_m, s_pad // tile_k)

    # Explicit scoped-VMEM budget: double-buffered inputs/outputs + f32 acc,
    # 2x headroom, clamped well below v7x's 64 MiB physical VMEM.
    elems = (2 * (tile_m * tile_k + tile_k * in_total + in_total * lane_pad
                  + 2 * tile_m * lane_pad) + tile_m * lane_pad)
    vmem_limit = int(min(max(2 * 4 * elems, 32 * 1024 * 1024),
                         48 * 1024 * 1024))

    slab = pl.pallas_call(
        _nodenet_block_kernel,
        out_shape=jax.ShapeDtypeStruct((d_pad, lane_pad), f32),
        grid=grid,
        in_specs=[
            pl.BlockSpec((tile_m, tile_k), lambda m, k: (m, k)),      # A block
            pl.BlockSpec((tile_k, in_total), lambda m, k: (k, 0)),    # X block
            pl.BlockSpec((in_total, lane_pad), lambda m, k: (0, 0)),  # W slab
            pl.BlockSpec((tile_m, lane_pad), lambda m, k: (m, 0)),    # bias
        ],
        out_specs=pl.BlockSpec((tile_m, lane_pad), lambda m, k: (m, 0)),
        scratch_shapes=[pltpu.VMEM((tile_m, lane_pad), jnp.float32)],
        compiler_params=pltpu.CompilerParams(
            dimension_semantics=("parallel", "arbitrary"),
            vmem_limit_bytes=vmem_limit),
    )(a, x, w, bias)

    # Lane/row-disjoint slab -> three outputs (free layout plumbing).
    h_cell = slab[off_cell:off_cell + n_cell, col_cell:col_cell + out_node]
    net_out = slab[off_net:off_net + n_net, col_net:col_net + out_net]
    h_gcell = slab[off_gcell:off_gcell + n_gcell,
                   col_gcell:col_gcell + out_hanna]
    return h_cell, net_out, h_gcell


# ---------------------------------------------------------------------------
# Deterministic parameter / input construction + reference check
# ---------------------------------------------------------------------------
def _xavier(key, shape):
    fan_in, fan_out = shape
    limit = (6.0 / (fan_in + fan_out)) ** 0.5
    return jax.random.uniform(key, shape, jnp.float32, -limit, limit)


def _both_norms_ref(adj):
    out_deg = jnp.clip(adj.sum(axis=0), 1.0, None)
    in_deg = jnp.clip(adj.sum(axis=1), 1.0, None)
    return ((out_deg ** -0.5).reshape(-1, 1).astype(jnp.float32),
            (in_deg ** -0.5).reshape(-1, 1).astype(jnp.float32))


if __name__ == "__main__":
    hidden_node_feats = 32
    hidden_net_feats = 16
    hidden_pin_feats = 8
    hidden_hanna_feats = 16
    hidden_edge_feats = 8
    out_node_feats = hidden_node_feats
    out_net_feats = hidden_net_feats

    n_cell, n_net, n_gcell = 16, 8, 16
    n_pin_edges, n_grid_edges = 24, 24

    key = jax.random.PRNGKey(0)
    ks = jax.random.split(key, 20)

    node_feat = jax.random.normal(ks[0], (n_cell, hidden_node_feats), jnp.float32)
    net_feat = jax.random.normal(ks[1], (n_net, hidden_net_feats), jnp.float32)
    hanna_feat = jax.random.normal(ks[2], (n_gcell, hidden_hanna_feats), jnp.float32)
    pin_feat = jax.random.normal(ks[3], (n_pin_edges, hidden_pin_feats), jnp.float32)     # unused (GCN)
    edge_feat = jax.random.normal(ks[4], (n_grid_edges, hidden_edge_feats), jnp.float32)  # unused (GCN)

    # Dense relation adjacencies [n_dst, n_src]
    graph = {
        "pins":       (jax.random.uniform(ks[5], (n_net, n_cell)) < 0.3).astype(jnp.float32),
        "pinned":     (jax.random.uniform(ks[6], (n_cell, n_net)) < 0.3).astype(jnp.float32),
        "connect":    (jax.random.uniform(ks[7], (n_gcell, n_gcell)) < 0.2).astype(jnp.float32),
        "point_to":   (jax.random.uniform(ks[8], (n_gcell, n_cell)) < 0.25).astype(jnp.float32),
        "point_from": (jax.random.uniform(ks[9], (n_cell, n_gcell)) < 0.25).astype(jnp.float32),
    }

    params = {
        "pins_w":      _xavier(ks[10], (hidden_node_feats, out_net_feats)),
        "pins_b":      jnp.zeros((out_net_feats,), jnp.float32),
        "pinned_w":    _xavier(ks[11], (hidden_net_feats, out_node_feats)),
        "pinned_b":    jnp.zeros((out_node_feats,), jnp.float32),
        "connect_w":   _xavier(ks[12], (hidden_hanna_feats, hidden_hanna_feats)),
        "connect_b":   jnp.zeros((hidden_hanna_feats,), jnp.float32),
        "pointto_w":   _xavier(ks[13], (hidden_node_feats, hidden_hanna_feats)),
        "pointto_b":   jnp.zeros((hidden_hanna_feats,), jnp.float32),
        "pointfrom_w": _xavier(ks[14], (hidden_hanna_feats, hidden_node_feats)),
        "pointfrom_b": jnp.zeros((hidden_node_feats,), jnp.float32),
        "net_lin_w":   _xavier(ks[15], (hidden_net_feats, hidden_net_feats)),
        "net_lin_b":   jax.random.normal(ks[16], (hidden_net_feats,), jnp.float32) * 0.01,
    }

    fwd = jax.jit(functools.partial(node_net_gnn_forward, params, graph))
    cell_out, net_out, gcell_out = fwd(node_feat, net_feat, pin_feat,
                                       hanna_feat, edge_feat)
    jax.block_until_ready((cell_out, net_out, gcell_out))

    assert cell_out.shape == (n_cell, out_node_feats)
    assert net_out.shape == (n_net, out_net_feats)
    assert gcell_out.shape == (n_gcell, hidden_hanna_feats)

    # Pure-JAX reference (un-fused, A-first ordering) for all three outputs.
    def ref_conv(adj, x, w, b):
        ns, nd = _both_norms_ref(adj)
        return (adj @ (x * ns)) @ w * nd + b

    ref_cell = (ref_conv(graph["pinned"], net_feat, params["pinned_w"], params["pinned_b"])
                + ref_conv(graph["point_from"], hanna_feat, params["pointfrom_w"], params["pointfrom_b"]))
    ref_net = (ref_conv(graph["pins"], node_feat, params["pins_w"], params["pins_b"])
               + net_feat @ params["net_lin_w"] + params["net_lin_b"])
    ref_gcell = (ref_conv(graph["connect"], hanna_feat, params["connect_w"], params["connect_b"])
                 + ref_conv(graph["point_to"], node_feat, params["pointto_w"], params["pointto_b"]))

    assert jnp.allclose(ref_cell, cell_out, rtol=1e-4, atol=1e-4), "cell mismatch"
    assert jnp.allclose(ref_net, net_out, rtol=1e-4, atol=1e-4), "net mismatch"
    assert jnp.allclose(ref_gcell, gcell_out, rtol=1e-4, atol=1e-4), "gcell mismatch"

    print("KERNEL_OK")
</pallas_src>

<mosaic_0001>
module attributes {stable_mosaic.version = 11 : i64} {
  func.func @_nodenet_block_kernel(%arg0: i32, %arg1: i32, %arg2: memref<40x40xf32, #tpu.memory_space<vmem>>, %arg3: memref<40x64xf32, #tpu.memory_space<vmem>>, %arg4: memref<64x128xf32, #tpu.memory_space<vmem>>, %arg5: memref<40x128xf32, #tpu.memory_space<vmem>>, %arg6: memref<40x128xf32, #tpu.memory_space<vmem>>, %arg7: memref<40x128xf32, #tpu.memory_space<vmem>>) attributes {dimension_semantics = [#tpu.dimension_semantics<parallel>, #tpu.dimension_semantics<arbitrary>], iteration_bounds = array<i64: 1, 1>, scalar_prefetch = 0 : i64, scratch_operands = 1 : i64, tpu.core_type = #tpu.core_type<tc>, window_params = [{transform_indices = @transform_0, window_bounds = array<i64: 40, 40>}, {transform_indices = @transform_1, window_bounds = array<i64: 40, 64>}, {pipeline_mode = #tpu.pipeline_mode<synchronous>, transform_indices = @transform_2, window_bounds = array<i64: 64, 128>}, {transform_indices = @transform_3, window_bounds = array<i64: 40, 128>}, {transform_indices = @transform_4, window_bounds = array<i64: 40, 128>}]} {
    %c0_i32 = arith.constant 0 : i32
    %0 = arith.cmpi eq, %arg1, %c0_i32 : i32
    %1 = arith.extui %0 : i1 to i32
    %c0_i32_0 = arith.constant 0 : i32
    %2 = arith.cmpi ne, %1, %c0_i32_0 : i32
    scf.if %2 {
      %cst_13 = arith.constant 0.000000e+00 : f32
      %14 = vector.broadcast %cst_13 : f32 to vector<40x128xf32>
      %c0_14 = arith.constant 0 : index
      %c0_15 = arith.constant 0 : index
      %15 = vector.load %arg7[%c0_14, %c0_15] : memref<40x128xf32, #tpu.memory_space<vmem>>, vector<40x128xf32>
      tpu.vector_store %arg7[%c0_14, %c0_15], %14 {strides = array<i32>} : memref<40x128xf32, #tpu.memory_space<vmem>>, vector<40x128xf32>,
    } else {
    }
    %c0 = arith.constant 0 : index
    %c0_1 = arith.constant 0 : index
    %3 = vector.load %arg3[%c0, %c0_1] : memref<40x64xf32, #tpu.memory_space<vmem>>, vector<40x64xf32>
    %c0_2 = arith.constant 0 : index
    %c0_3 = arith.constant 0 : index
    %4 = vector.load %arg4[%c0_2, %c0_3] : memref<64x128xf32, #tpu.memory_space<vmem>>, vector<64x128xf32>
    %cst = arith.constant dense<0.000000e+00> : vector<40x128xf32>
    %5 = tpu.matmul %3, %4, %cst {dimension_numbers = #tpu.dot_dimension_numbers<[1], [0], [0], [1], [0, 0, 1, 1], [], []>} : vector<40x64xf32>, vector<64x128xf32>, vector<40x128xf32> -> vector<40x128xf32>
    %c0_4 = arith.constant 0 : index
    %c0_5 = arith.constant 0 : index
    %6 = vector.load %arg7[%c0_4, %c0_5] : memref<40x128xf32, #tpu.memory_space<vmem>>, vector<40x128xf32>
    %c0_6 = arith.constant 0 : index
    %c0_7 = arith.constant 0 : index
    %7 = vector.load %arg2[%c0_6, %c0_7] : memref<40x40xf32, #tpu.memory_space<vmem>>, vector<40x40xf32>
    %cst_8 = arith.constant dense<0.000000e+00> : vector<40x128xf32>
    %8 = tpu.matmul %7, %5, %cst_8 {dimension_numbers = #tpu.dot_dimension_numbers<[1], [0], [0], [1], [0, 0, 1, 1], [], []>} : vector<40x40xf32>, vector<40x128xf32>, vector<40x128xf32> -> vector<40x128xf32>
    %9 = arith.addf %6, %8 : vector<40x128xf32>
    %c0_9 = arith.constant 0 : index
    %c0_10 = arith.constant 0 : index
    %10 = vector.load %arg7[%c0_9, %c0_10] : memref<40x128xf32, #tpu.memory_space<vmem>>, vector<40x128xf32>
    tpu.vector_store %arg7[%c0_9, %c0_10], %9 {strides = array<i32>} : memref<40x128xf32, #tpu.memory_space<vmem>>, vector<40x128xf32>,
    %c0_i32_11 = arith.constant 0 : i32
    %11 = arith.cmpi eq, %arg1, %c0_i32_11 : i32
    %12 = arith.extui %11 : i1 to i32
    %c0_i32_12 = arith.constant 0 : i32
    %13 = arith.cmpi ne, %12, %c0_i32_12 : i32
    scf.if %13 {
      %c0_13 = arith.constant 0 : index
      %c0_14 = arith.constant 0 : index
      %14 = vector.load %arg7[%c0_13, %c0_14] : memref<40x128xf32, #tpu.memory_space<vmem>>, vector<40x128xf32>
      %c0_15 = arith.constant 0 : index
      %c0_16 = arith.constant 0 : index
      %15 = vector.load %arg5[%c0_15, %c0_16] : memref<40x128xf32, #tpu.memory_space<vmem>>, vector<40x128xf32>
      %16 = arith.addf %14, %15 : vector<40x128xf32>
      %c0_17 = arith.constant 0 : index
      %c0_18 = arith.constant 0 : index
      %17 = vector.load %arg6[%c0_17, %c0_18] : memref<40x128xf32, #tpu.memory_space<vmem>>, vector<40x128xf32>
      tpu.vector_store %arg6[%c0_17, %c0_18], %16 {strides = array<i32>} : memref<40x128xf32, #tpu.memory_space<vmem>>, vector<40x128xf32>,
    } else {
    }
    return
  }
  func.func @transform_0(%arg0: i32, %arg1: i32) -> (i32, i32) {
    %c0_i32 = arith.constant 0 : i32
    return %arg0, %arg1 : i32, i32
  }
  func.func @transform_1(%arg0: i32, %arg1: i32) -> (i32, i32) {
    %c0_i32 = arith.constant 0 : i32
    %c0_i32_0 = arith.constant 0 : i32
    return %arg1, %c0_i32 : i32, i32
  }
  func.func @transform_2(%arg0: i32, %arg1: i32) -> (i32, i32) {
    %c0_i32 = arith.constant 0 : i32
    %c0_i32_0 = arith.constant 0 : i32
    %c0_i32_1 = arith.constant 0 : i32
    return %c0_i32, %c0_i32_0 : i32, i32
  }
  func.func @transform_3(%arg0: i32, %arg1: i32) -> (i32, i32) {
    %c0_i32 = arith.constant 0 : i32
    %c0_i32_0 = arith.constant 0 : i32
    return %arg0, %c0_i32 : i32, i32
  }
  func.func @transform_4(%arg0: i32, %arg1: i32) -> (i32, i32) {
    %c0_i32 = arith.constant 0 : i32
    %c0_i32_0 = arith.constant 0 : i32
    return %arg0, %c0_i32 : i32, i32
  }
}

</mosaic_0001>

<llo_original>
// kernel: node_net_gnn_forward.1
$region0: #{node_net_gnn_forward.1}
  #allocation0 [shape = 'u32[]', space=smem, size = 0x4, offset = 0x4, fixed_abs, tag = 'smem constant byte address 0x4 - core index']
  #allocation1 [shape = 'u32[144,128]{1,0:T(1,128)}', space=vmem, size = 0x12000, scoped, tag = 'internal scratch']
  #allocation2 [shape = 'f32[40,128]{1,0:T(8,128)}', space=vmem, size = 0x5000, scoped, tag = 'scratch operand']
  %s0 = inlined_call_operand.vmem [shape: f32[40,40], index: 0, kind: input, shape index: {}]
  %s1 = inlined_call_operand.vmem [shape: f32[40,64], index: 1, kind: input, shape index: {}]
  %s2 = inlined_call_operand.vmem [shape: f32[64,128], index: 2, kind: input, shape index: {}]
  %s3 = inlined_call_operand.vmem [shape: f32[40,128], index: 3, kind: input, shape index: {}]
  %s4 = inlined_call_operand.vmem [shape: f32[40,128], index: 4, kind: output, shape index: {}]
  %s5 = sld [smem:[#allocation0]]
  $region34: #{node_net_gnn_forward.1} parent=0
    _
  %s7 = ssub.s32 1, %s5
  %s8 = scalar_select 0, %s7, %s5
  // Predicated region
  $region2: #{node_net_gnn_forward.1} parent=0 // pred_check
    _
  $region3: #{node_net_gnn_forward.1} parent=0 // pred_check_branch
    %10 = sbr.rel (0) target = $region5
  $region4: #{node_net_gnn_forward.1} parent=0 // pred_region
    _
  $region5: #{node_net_gnn_forward.1} parent=0 // pred_fallthru
    _
  // Predicated region
  $region6: #{node_net_gnn_forward.1} parent=0 // pred_check
    _
  $region7: #{node_net_gnn_forward.1} parent=0 // pred_check_branch
    %12 = sbr.rel (0) target = $region9
  $region8: #{node_net_gnn_forward.1} parent=0 // pred_region
    _
  $region9: #{node_net_gnn_forward.1} parent=0 // pred_fallthru
    _
  // Predicated region
  $region10: #{node_net_gnn_forward.1} parent=0 // pred_check
    _
  $region11: #{node_net_gnn_forward.1} parent=0 // pred_check_branch
    %14 = sbr.rel (0) target = $region13
  $region12: #{node_net_gnn_forward.1} parent=0 // pred_region
    _
  $region13: #{node_net_gnn_forward.1} parent=0 // pred_fallthru
    _
  // Predicated region
  $region14: #{node_net_gnn_forward.1} parent=0 // pred_check
    _
  $region15: #{node_net_gnn_forward.1} parent=0 // pred_check_branch
    %16 = sbr.rel (0) target = $region17
  $region16: #{node_net_gnn_forward.1} parent=0 // pred_region
    _
  $region17: #{node_net_gnn_forward.1} parent=0 // pred_fallthru
    _
  %p17 = scmp.eq.s32.totalorder 0, 0
  // Predicated region
  $region18: #{node_net_gnn_forward.1} parent=0 // pred_check
    %p18 = pneg %p17
  $region19: #{node_net_gnn_forward.1} parent=0 // pred_check_branch
    %20 = sbr.rel (%p18) target = $region21
  $region20: #{node_net_gnn_forward.1} parent=0 // pred_region
    %21 = vst [vmem:[#allocation2] sm:$0xff] 0.0
    %22 = vst [vmem:[#allocation2 + $0x8] sm:$0xff] 0.0
    %23 = vst [vmem:[#allocation2 + $0x10] sm:$0xff] 0.0
    %24 = vst [vmem:[#allocation2 + $0x18] sm:$0xff] 0.0
    %25 = vst [vmem:[#allocation2 + $0x20] sm:$0xff] 0.0
  $region21: #{node_net_gnn_forward.1} parent=0 // pred_fallthru
    _
  %v26 = vld [vmem:[%s1] sm:$0xff]
  %v27 = vld [vmem:[%s1 + $0x8] sm:$0xff]
  %v28 = vld [vmem:[%s1 + $0x10] sm:$0xff]
  %v29 = vld [vmem:[%s1 + $0x18] sm:$0xff]
  %v30 = vld [vmem:[%s1 + $0x20] sm:$0xff]
  %v31 = vld [vmem:[%s2] sm:$0xff]
  %v32 = vld [vmem:[%s2 + $0x8] sm:$0xff]
  %v33 = vld [vmem:[%s2 + $0x10] sm:$0xff]
  %v34 = vld [vmem:[%s2 + $0x18] sm:$0xff]
  %v35 = vld [vmem:[%s2 + $0x20] sm:$0xff]
  %v36 = vld [vmem:[%s2 + $0x28] sm:$0xff]
  %v37 = vld [vmem:[%s2 + $0x30] sm:$0xff]
  %v38 = vld [vmem:[%s2 + $0x38] sm:$0xff]
  %vm39 = vcmask 523264
  %v41 = vsel %vm39, %v26, 0
  %v44 = vsel %vm39, %v27, 0
  %v47 = vsel %vm39, %v28, 0
  %v50 = vsel %vm39, %v29, 0
  %v53 = vsel %vm39, %v30, 0
  %55 = vmatprep.subr.mxu0 0.0
  %56 = vmatpush1.msra.mxu0 %v31
  %57 = vmatprep.subr.mxu0 0.0
  %58 = vmatpush1.msra.mxu0 %v32
  %59 = vmatprep.subr.mxu0 0.0
  %60 = vmatpush1.msra.mxu0 %v33
  %61 = vmatprep.subr.mxu0 0.0
  %62 = vmatpush1.msra.mxu0 %v34
  %63 = vmatprep.subr.mxu0 0.0
  %64 = vmatpush1.msra.mxu0 %v35
  %65 = vmatprep.subr.mxu0 0.0
  %66 = vmatpush1.msra.mxu0 %v36
  %67 = vmatprep.subr.mxu0 0.0
  %68 = vmatpush1.msra.mxu0 %v37
  %69 = vmatprep.subr.mxu0 0.0
  %70 = vmatpush1.msra.mxu0 %v38
  %71 = vmatprep.subr.mxu0 0.0
  %72 = vmatpush1.msra.mxu0 0.0
  %73 = vmatprep.subr.mxu0 0.0
  %74 = vmatpush1.msra.mxu0 0.0
  %75 = vmatprep.subr.mxu0 0.0
  %76 = vmatpush1.msra.mxu0 0.0
  %77 = vmatprep.subr.mxu0 0.0
  %78 = vmatpush1.msra.mxu0 0.0
  %79 = vmatprep.subr.mxu0 0.0
  %80 = vmatpush1.msra.mxu0 0.0
  %81 = vmatprep.subr.mxu0 0.0
  %82 = vmatpush1.msra.mxu0 0.0
  %83 = vmatprep.subr.mxu0 0.0
  %84 = vmatpush1.msra.mxu0 0.0
  %85 = vmatprep.subr.mxu0 0.0
  %86 = vmatpush1.msra.mxu0 0.0
  %87 = vmatprep.subr.mxu0 0.0
  %88 = vmatpush1.msra.mxu0 0.0
  %89 = vmatprep.subr.mxu0 0.0
  %90 = vmatpush1.msra.mxu0 0.0
  %91 = vmatprep.subr.mxu0 0.0
  %92 = vmatpush1.msra.mxu0 0.0
  %93 = vmatprep.subr.mxu0 0.0
  %94 = vmatpush1.msra.mxu0 0.0
  %95 = vmatprep.subr.mxu0 0.0
  %96 = vmatpush1.msra.mxu0 0.0
  %97 = vmatprep.subr.mxu0 0.0
  %98 = vmatpush1.msra.mxu0 0.0
  %99 = vmatprep.subr.mxu0 0.0
  %100 = vmatpush1.msra.mxu0 0.0
  %101 = vmatprep.subr.mxu0 0.0
  %102 = vmatpush1.msra.mxu0 0.0
  %103 = vmatprep.subr.mxu0 0.0
  %104 = vmatpush1.msra.mxu0 0.0
  %105 = vmatprep.subr.mxu0 0.0
  %106 = vmatpush1.msra.mxu0 0.0
  %107 = vmatprep.subr.mxu0 0.0
  %108 = vmatpush1.msra.mxu0 0.0
  %109 = vmatprep.subr.mxu0 0.0
  %110 = vmatpush1.msra.mxu0 0.0
  %111 = vmatprep.subr.mxu0 0.0
  %112 = vmatpush1.msra.mxu0 0.0
  %113 = vmatprep.subr.mxu0 0.0
  %114 = vmatpush1.msra.mxu0 0.0
  %115 = vmatprep.subr.mxu0 0.0
  %116 = vmatpush1.msra.mxu0 0.0
  %117 = vmatprep.subr.mxu0 0.0
  %118 = vmatpush1.msra.mxu0 0.0
  %119 = vmatprep.mubr.f32.mxu0 0.0
  %120 = vmatmul.mubr.f32.gmra.mrb[0].mxu0 %v41
  %v121 = vpop.f32.mrb[0].mxu0
  %v122 = vadd.f32 0.0, %v121
  %v123 = vpop.f32.mrb[0].mxu0
  %124 = vmatprep.mubr.f32.mxu0 0.0
  %125 = vmatmul.mubr.f32.gmra.mrb[0].mxu0 %v44
  %v126 = vpop.f32.mrb[0].mxu0
  %v127 = vadd.f32 0.0, %v126
  %v128 = vpop.f32.mrb[0].mxu0
  %129 = vmatprep.mubr.f32.mxu0 0.0
  %130 = vmatmul.mubr.f32.gmra.mrb[0].mxu0 %v47
  %v131 = vpop.f32.mrb[0].mxu0
  %v132 = vadd.f32 0.0, %v131
  %v133 = vpop.f32.mrb[0].mxu0
  %134 = vmatprep.mubr.f32.mxu0 0.0
  %135 = vmatmul.mubr.f32.gmra.mrb[0].mxu0 %v50
  %v136 = vpop.f32.mrb[0].mxu0
  %v137 = vadd.f32 0.0, %v136
  %v138 = vpop.f32.mrb[0].mxu0
  %139 = vmatprep.mubr.f32.mxu0 0.0
  %140 = vmatmul.mubr.f32.gmra.mrb[0].mxu0 %v53
  %v141 = vpop.f32.mrb[0].mxu0
  %v142 = vadd.f32 0.0, %v141
  %v143 = vpop.f32.mrb[0].mxu0
  %144 = vdwg.mxu0
  %v145 = vld [vmem:[#allocation2] sm:$0xff]
  %v146 = vld [vmem:[#allocation2 + $0x8] sm:$0xff]
  %v147 = vld [vmem:[#allocation2 + $0x10] sm:$0xff]
  %v148 = vld [vmem:[#allocation2 + $0x18] sm:$0xff]
  %v149 = vld [vmem:[#allocation2 + $0x20] sm:$0xff]
  %v150 = vld [vmem:[%s0] sm:$0xff]
  %v151 = vld [vmem:[%s0 + $0x8] sm:$0xff]
  %v152 = vld [vmem:[%s0 + $0x10] sm:$0xff]
  %v153 = vld [vmem:[%s0 + $0x18] sm:$0xff]
  %v154 = vld [vmem:[%s0 + $0x20] sm:$0xff]
  %vm155 = vcmask 326656
  %v157 = vsel %vm155, %v150, 0
  %v160 = vsel %vm155, %v151, 0
  %v163 = vsel %vm155, %v152, 0
  %v166 = vsel %vm155, %v153, 0
  %v169 = vsel %vm155, %v154, 0
  %171 = vmatprep.subr.mxu0 0.0
  %172 = vmatpush1.msra.mxu0 %v122
  %173 = vmatprep.subr.mxu0 0.0
  %174 = vmatpush1.msra.mxu0 %v127
  %175 = vmatprep.subr.mxu0 0.0
  %176 = vmatpush1.msra.mxu0 %v132
  %177 = vmatprep.subr.mxu0 0.0
  %178 = vmatpush1.msra.mxu0 %v137
  %179 = vmatprep.subr.mxu0 0.0
  %180 = vmatpush1.msra.mxu0 %v142
  %181 = vmatprep.subr.mxu0 0.0
  %182 = vmatpush1.msra.mxu0 0.0
  %183 = vmatprep.subr.mxu0 0.0
  %184 = vmatpush1.msra.mxu0 0.0
  %185 = vmatprep.subr.mxu0 0.0
  %186 = vmatpush1.msra.mxu0 0.0
  %187 = vmatprep.subr.mxu0 0.0
  %188 = vmatpush1.msra.mxu0 0.0
  %189 = vmatprep.subr.mxu0 0.0
  %190 = vmatpush1.msra.mxu0 0.0
  %191 = vmatprep.subr.mxu0 0.0
  %192 = vmatpush1.msra.mxu0 0.0
  %193 = vmatprep.subr.mxu0 0.0
  %194 = vmatpush1.msra.mxu0 0.0
  %195 = vmatprep.subr.mxu0 0.0
  %196 = vmatpush1.msra.mxu0 0.0
  %197 = vmatprep.subr.mxu0 0.0
  %198 = vmatpush1.msra.mxu0 0.0
  %199 = vmatprep.subr.mxu0 0.0
  %200 = vmatpush1.msra.mxu0 0.0
  %201 = vmatprep.subr.mxu0 0.0
  %202 = vmatpush1.msra.mxu0 0.0
  %203 = vmatprep.subr.mxu0 0.0
  %204 = vmatpush1.msra.mxu0 0.0
  %205 = vmatprep.subr.mxu0 0.0
  %206 = vmatpush1.msra.mxu0 0.0
  %207 = vmatprep.subr.mxu0 0.0
  %208 = vmatpush1.msra.mxu0 0.0
  %209 = vmatprep.subr.mxu0 0.0
  %210 = vmatpush1.msra.mxu0 0.0
  %211 = vmatprep.subr.mxu0 0.0
  %212 = vmatpush1.msra.mxu0 0.0
  %213 = vmatprep.subr.mxu0 0.0
  %214 = vmatpush1.msra.mxu0 0.0
  %215 = vmatprep.subr.mxu0 0.0
  %216 = vmatpush1.msra.mxu0 0.0
  %217 = vmatprep.subr.mxu0 0.0
  %218 = vmatpush1.msra.mxu0 0.0
  %219 = vmatprep.subr.mxu0 0.0
  %220 = vmatpush1.msra.mxu0 0.0
  %221 = vmatprep.subr.mxu0 0.0
  %222 = vmatpush1.msra.mxu0 0.0
  %223 = vmatprep.subr.mxu0 0.0
  %224 = vmatpush1.msra.mxu0 0.0
  %225 = vmatprep.subr.mxu0 0.0
  %226 = vmatpush1.msra.mxu0 0.0
  %227 = vmatprep.subr.mxu0 0.0
  %228 = vmatpush1.msra.mxu0 0.0
  %229 = vmatprep.subr.mxu0 0.0
  %230 = vmatpush1.msra.mxu0 0.0
  %231 = vmatprep.subr.mxu0 0.0
  %232 = vmatpush1.msra.mxu0 0.0
  %233 = vmatprep.subr.mxu0 0.0
  %234 = vmatpush1.msra.mxu0 0.0
  %235 = vmatprep.mubr.f32.mxu0 0.0
  %236 = vmatmul.mubr.f32.gmra.mrb[0].mxu0 %v157
  %v237 = vpop.f32.mrb[0].mxu0
  %v238 = vadd.f32 0.0, %v237
  %v239 = vpop.f32.mrb[0].mxu0
  %240 = vmatprep.mubr.f32.mxu0 0.0
  %241 = vmatmul.mubr.f32.gmra.mrb[0].mxu0 %v160
  %v242 = vpop.f32.mrb[0].mxu0
  %v243 = vadd.f32 0.0, %v242
  %v244 = vpop.f32.mrb[0].mxu0
  %245 = vmatprep.mubr.f32.mxu0 0.0
  %246 = vmatmul.mubr.f32.gmra.mrb[0].mxu0 %v163
  %v247 = vpop.f32.mrb[0].mxu0
  %v248 = vadd.f32 0.0, %v247
  %v249 = vpop.f32.mrb[0].mxu0
  %250 = vmatprep.mubr.f32.mxu0 0.0
  %251 = vmatmul.mubr.f32.gmra.mrb[0].mxu0 %v166
  %v252 = vpop.f32.mrb[0].mxu0
  %v253 = vadd.f32 0.0, %v252
  %v254 = vpop.f32.mrb[0].mxu0
  %255 = vmatprep.mubr.f32.mxu0 0.0
  %256 = vmatmul.mubr.f32.gmra.mrb[0].mxu0 %v169
  %v257 = vpop.f32.mrb[0].mxu0
  %v258 = vadd.f32 0.0, %v257
  %v259 = vpop.f32.mrb[0].mxu0
  %260 = vdwg.mxu0
  %v261 = vadd.f32 %v145, %v238
  %v262 = vadd.f32 %v146, %v243
  %v263 = vadd.f32 %v147, %v248
  %v264 = vadd.f32 %v148, %v253
  %v265 = vadd.f32 %v149, %v258
  %266 = vst [vmem:[#allocation2] sm:$0xff] %v261
  %267 = vst [vmem:[#allocation2 + $0x8] sm:$0xff] %v262
  %268 = vst [vmem:[#allocation2 + $0x10] sm:$0xff] %v263
  %269 = vst [vmem:[#allocation2 + $0x18] sm:$0xff] %v264
  %270 = vst [vmem:[#allocation2 + $0x20] sm:$0xff] %v265
  // Predicated region
  $region22: #{node_net_gnn_forward.1} parent=0 // pred_check
    %p271 = pneg %p17
  $region23: #{node_net_gnn_forward.1} parent=0 // pred_check_branch
    %273 = sbr.rel (%p271) target = $region25
  $region24: #{node_net_gnn_forward.1} parent=0 // pred_region
    %v274 = vld [vmem:[#allocation2] sm:$0xff]
    %v275 = vld [vmem:[#allocation2 + $0x8] sm:$0xff]
    %v276 = vld [vmem:[#allocation2 + $0x10] sm:$0xff]
    %v277 = vld [vmem:[#allocation2 + $0x18] sm:$0xff]
    %v278 = vld [vmem:[#allocation2 + $0x20] sm:$0xff]
    %v279 = vld [vmem:[%s3] sm:$0xff]
    %v280 = vld [vmem:[%s3 + $0x8] sm:$0xff]
    %v281 = vld [vmem:[%s3 + $0x10] sm:$0xff]
    %v282 = vld [vmem:[%s3 + $0x18] sm:$0xff]
    %v283 = vld [vmem:[%s3 + $0x20] sm:$0xff]
    %v284 = vadd.f32 %v274, %v279
    %v285 = vadd.f32 %v275, %v280
    %v286 = vadd.f32 %v276, %v281
    %v287 = vadd.f32 %v277, %v282
    %v288 = vadd.f32 %v278, %v283
    %289 = vst [vmem:[%s4] sm:$0xff] %v284
    %290 = vst [vmem:[%s4 + $0x8] sm:$0xff] %v285
    %291 = vst [vmem:[%s4 + $0x10] sm:$0xff] %v286
    %292 = vst [vmem:[%s4 + $0x18] sm:$0xff] %v287
    %293 = vst [vmem:[%s4 + $0x20] sm:$0xff] %v288
  $region25: #{node_net_gnn_forward.1} parent=0 // pred_fallthru
    _
  // Predicated region
  $region26: #{node_net_gnn_forward.1} parent=0 // pred_check
    _
  $region27: #{node_net_gnn_forward.1} parent=0 // pred_check_branch
    %295 = sbr.rel (0) target = $region29
  $region28: #{node_net_gnn_forward.1} parent=0 // pred_region
    _
  $region29: #{node_net_gnn_forward.1} parent=0 // pred_fallthru
    _
  // Predicated region
  $region30: #{node_net_gnn_forward.1} parent=0 // pred_check
    _
  $region31: #{node_net_gnn_forward.1} parent=0 // pred_check_branch
    %297 = sbr.rel (0) target = $region33
  $region32: #{node_net_gnn_forward.1} parent=0 // pred_region
    _
  $region33: #{node_net_gnn_forward.1} parent=0 // pred_fallthru
    _

</llo_original>
